<compile_context>
chip_gen: v5e
topology: v5e:2x2
jax: 0.10.0
libtpu: 0.0.40
codegen_flags: <defaults>
</compile_context>

<pallas_src>
import math
import jax
import jax.numpy as jnp
from jax.experimental import pallas as pl
from jax.experimental.pallas import tpu as pltpu


def _round_up(x, m):
    return ((x + m - 1) // m) * m


def _sublane_multiple(dtype):
    # f32 -> 8, bf16/f16 -> 16, int8/fp8 -> 32 sublane packing.
    return {4: 8, 2: 16, 1: 32}.get(jnp.dtype(dtype).itemsize, 8)


# ---------------------------------------------------------------------------
# Pass 1: masked table  W' = weight * (|scores| >= tau)   (computed once)
# ---------------------------------------------------------------------------
def _mask_table_kernel(tau_ref, w_ref, s_ref, o_ref):
    tau = tau_ref[0]                                          # SMEM scalar threshold
    keep = jnp.abs(s_ref[...].astype(jnp.float32)) >= tau     # compare in f32 (v5e-safe)
    o_ref[...] = jnp.where(keep, w_ref[...], jnp.zeros_like(w_ref[...]))


def _build_masked_table(weight, scores, tau):
    V, D = weight.shape
    row_tile = V if V <= 1024 else 512                        # multiple of 8/16/32, or full V
    grid = (pl.cdiv(V, row_tile),)
    return pl.pallas_call(
        _mask_table_kernel,
        grid_spec=pltpu.PrefetchScalarGridSpec(
            num_scalar_prefetch=0,
            grid=grid,
            in_specs=[
                pl.BlockSpec(memory_space=pltpu.MemorySpace.SMEM),  # tau, shape (1,)
                pl.BlockSpec((row_tile, D), lambda i: (i, 0)),      # weight rows
                pl.BlockSpec((row_tile, D), lambda i: (i, 0)),      # scores rows
            ],
            out_specs=pl.BlockSpec((row_tile, D), lambda i: (i, 0)),
        ),
        out_shape=jax.ShapeDtypeStruct((V, D), weight.dtype),
        compiler_params=pltpu.CompilerParams(dimension_semantics=("parallel",)),
    )(tau, weight, scores)


# ---------------------------------------------------------------------------
# Pass 2: embedding gather from the VMEM-resident masked table
# ---------------------------------------------------------------------------
def _gather_kernel(ids_ref, table_ref, o_ref):
    t_tile = o_ref.shape[0]                     # static: tokens per grid step
    base = pl.program_id(0) * t_tile

    @pl.loop(0, t_tile)
    def _(t):
        row = ids_ref[base + t]                               # SMEM scalar read
        o_ref[pl.ds(t, 1), :] = table_ref[pl.ds(row, 1), :]   # VMEM-local row copy


def _gather_rows(masked_table, flat_ids, token_tile=256):
    V, D = masked_table.shape
    N = flat_ids.shape[0]
    sub = _sublane_multiple(masked_table.dtype)

    t_tile = min(token_tile, _round_up(max(N, 1), sub))
    t_tile = max(sub, (t_tile // sub) * sub)                  # multiple of sublane packing
    n_pad = _round_up(max(N, 1), t_tile)
    n_blocks = n_pad // t_tile
    ids_padded = jnp.zeros((n_pad,), jnp.int32).at[:N].set(flat_ids.astype(jnp.int32))

    itemsize = jnp.dtype(masked_table.dtype).itemsize
    # Resident table + double-buffered output tiles, with generous headroom.
    vmem_budget = 2 * V * D * itemsize + 4 * t_tile * D * itemsize + (4 << 20)
    vmem_budget = int(min(max(vmem_budget, 16 << 20), 100 << 20))

    # TODO(synk): for vocabularies too large for VMEM residency, switch this path to a
    # manual make_async_copy per-row gather with a deep prefetch ring from an HBM table.
    out = pl.pallas_call(
        _gather_kernel,
        grid_spec=pltpu.PrefetchScalarGridSpec(
            num_scalar_prefetch=1,                                   # flat ids -> SMEM
            grid=(n_blocks,),
            in_specs=[
                # Masked table: same block index every step -> DMA'd into VMEM once.
                pl.BlockSpec((V, D), lambda i, ids: (0, 0)),
            ],
            out_specs=pl.BlockSpec((t_tile, D), lambda i, ids: (i, 0)),
        ),
        out_shape=jax.ShapeDtypeStruct((n_pad, D), masked_table.dtype),
        compiler_params=pltpu.CompilerParams(
            dimension_semantics=("parallel",),
            vmem_limit_bytes=vmem_budget),
    )(ids_padded, masked_table)
    return out[:N]


# ---------------------------------------------------------------------------
# Forward
# ---------------------------------------------------------------------------
def masked_embedding_forward(ids, weight, scores, prune_ratio=0.5, token_tile=256):
    # TODO(synk): padding_idx / max_norm / dynamic_scaling and the non-'super_mask'
    # prune methods of the PyTorch module are not handled here (defaults only).
    V, D = weight.shape
    numel = V * D
    j = int((1.0 - prune_ratio) * numel)      # number of pruned (zeroed) entries
    keep = numel - j

    if keep <= 0:
        tau = jnp.full((1,), jnp.inf, jnp.float32)            # prune everything
    elif keep >= numel:
        tau = jnp.full((1,), -jnp.inf, jnp.float32)           # keep everything
    else:
        # Rank-based threshold (== GetSubnet when |scores| has no ties); top_k avoids
        # the full global sort which dominates at real vocab sizes.
        flat_abs = jnp.abs(scores.astype(jnp.float32)).reshape(-1)
        tau = jax.lax.top_k(flat_abs, keep)[0][keep - 1].reshape(1)

    masked_table = _build_masked_table(weight, scores, tau)
    out = _gather_rows(masked_table, ids.reshape(-1), token_tile=token_tile)
    return out.reshape(ids.shape + (D,))


def masked_embedding_reference(ids, weight, scores, prune_ratio=0.5):
    # Pure-JAX reference with the exact rank-based GetSubnet semantics.
    V, D = weight.shape
    flat = jnp.abs(scores).reshape(-1)
    order = jnp.argsort(flat)
    j = int((1.0 - prune_ratio) * flat.size)
    mask = jnp.zeros_like(flat).at[order[j:]].set(1.0).reshape(V, D)
    return (weight * mask)[ids]


if __name__ == "__main__":
    V, D = 64, 128          # num_embeddings, embedding_dim
    B, S = 2, 8             # batch, sequence
    prune_ratio = 0.5

    key = jax.random.PRNGKey(0)
    kw, ks, ki = jax.random.split(key, 3)

    # kaiming_uniform_(a=sqrt(5)) on a (V, D) weight -> U(-1/sqrt(D), 1/sqrt(D))
    bound = 1.0 / math.sqrt(D)
    weight = jax.random.uniform(kw, (V, D), jnp.float32, -bound, bound)
    scores = jax.random.uniform(ks, (V, D), jnp.float32, -bound, bound)
    ids = jax.random.randint(ki, (B, S), 0, V, dtype=jnp.int32)

    out = masked_embedding_forward(ids, weight, scores, prune_ratio)
    out = jax.block_until_ready(out)

    ref = masked_embedding_reference(ids, weight, scores, prune_ratio)
    assert out.shape == (B, S, D), out.shape
    assert jnp.allclose(out, ref, atol=1e-6, rtol=1e-6), "mismatch vs reference"
    print("KERNEL_OK")
</pallas_src>

<mosaic_0001>
module attributes {stable_mosaic.version = 11 : i64} {
  func.func @_mask_table_kernel(%arg0: i32, %arg1: memref<1xf32, #tpu.memory_space<smem>>, %arg2: memref<64x128xf32, #tpu.memory_space<vmem>>, %arg3: memref<64x128xf32, #tpu.memory_space<vmem>>, %arg4: memref<64x128xf32, #tpu.memory_space<vmem>>) attributes {dimension_semantics = [#tpu.dimension_semantics<parallel>], iteration_bounds = array<i64: 1>, scalar_prefetch = 0 : i64, scratch_operands = 0 : i64, tpu.core_type = #tpu.core_type<tc>, window_params = [{transform_indices = @transform_0, window_bounds = array<i64: 1>}, {transform_indices = @transform_1, window_bounds = array<i64: 64, 128>}, {transform_indices = @transform_2, window_bounds = array<i64: 64, 128>}, {transform_indices = @transform_3, window_bounds = array<i64: 64, 128>}]} {
    %c0 = arith.constant 0 : index
    %0 = memref.load %arg1[%c0] : memref<1xf32, #tpu.memory_space<smem>>
    %c0_0 = arith.constant 0 : index
    %c0_1 = arith.constant 0 : index
    %1 = vector.load %arg3[%c0_0, %c0_1] : memref<64x128xf32, #tpu.memory_space<vmem>>, vector<64x128xf32>
    %2 = math.absf %1 : vector<64x128xf32>
    %3 = vector.broadcast %0 : f32 to vector<64x128xf32>
    %4 = arith.cmpf oge, %2, %3 : vector<64x128xf32>
    %c0_2 = arith.constant 0 : index
    %c0_3 = arith.constant 0 : index
    %5 = vector.load %arg2[%c0_2, %c0_3] : memref<64x128xf32, #tpu.memory_space<vmem>>, vector<64x128xf32>
    %cst = arith.constant 0.000000e+00 : f32
    %6 = vector.broadcast %cst : f32 to vector<64x128xf32>
    %7 = arith.select %4, %5, %6 : vector<64x128xi1>, vector<64x128xf32>
    %c0_4 = arith.constant 0 : index
    %c0_5 = arith.constant 0 : index
    %8 = vector.load %arg4[%c0_4, %c0_5] : memref<64x128xf32, #tpu.memory_space<vmem>>, vector<64x128xf32>
    tpu.vector_store %arg4[%c0_4, %c0_5], %7 {strides = array<i32>} : memref<64x128xf32, #tpu.memory_space<vmem>>, vector<64x128xf32>,
    return
  }
  func.func @transform_0(%arg0: i32) -> i32 {
    %c0_i32 = arith.constant 0 : i32
    %c0_i32_0 = arith.constant 0 : i32
    return %c0_i32 : i32
  }
  func.func @transform_1(%arg0: i32) -> (i32, i32) {
    %c0_i32 = arith.constant 0 : i32
    %c0_i32_0 = arith.constant 0 : i32
    return %arg0, %c0_i32 : i32, i32
  }
  func.func @transform_2(%arg0: i32) -> (i32, i32) {
    %c0_i32 = arith.constant 0 : i32
    %c0_i32_0 = arith.constant 0 : i32
    return %arg0, %c0_i32 : i32, i32
  }
  func.func @transform_3(%arg0: i32) -> (i32, i32) {
    %c0_i32 = arith.constant 0 : i32
    %c0_i32_0 = arith.constant 0 : i32
    return %arg0, %c0_i32 : i32, i32
  }
}

</mosaic_0001>

<llo_original>
// kernel: tpu_custom_call.1
$region0: #{tpu_custom_call.1}
  #allocation0 [shape = 'u32[]', space=smem, size = 0x4, offset = 0x4, fixed_abs, tag = 'smem constant byte address 0x4 - core index']
  #allocation1 [shape = 'u32[72,128]{1,0:T(1,128)}', space=vmem, size = 0x9000, scoped, tag = 'internal scratch']
  #allocation2 [shape = 'f32[1]{0:T(128)S(6)}', space=smem, size = 0x200, scoped, tag = 'scoped memory for tpu_custom_call.1']
  %s0 = inlined_call_operand.<no memory space> [shape: f32[1], index: 0, kind: input, shape index: {}]
  %s1 = inlined_call_operand.hbm [shape: f32[64,128], index: 1, kind: input, shape index: {}]
  %s2 = inlined_call_operand.hbm [shape: f32[64,128], index: 2, kind: input, shape index: {}]
  %s3 = inlined_call_operand.hbm [shape: f32[64,128], index: 3, kind: output, shape index: {}]
  %s4 = sld [smem:[#allocation0]]
  $region30: #{tpu_custom_call.1} parent=0
    _
  %s6 = ssub.s32 1, %s4
  %s7 = scalar_select 0, %s6, %s4
  %8 = sst [smem:[#allocation2]] %s0
  $region1: #{tpu_custom_call.1} parent=0
    #allocation3 [shape = 'u8[32768]{0}', space=vmem, size = 0x8000, scoped, tag = 'input window, operand 1, single buffered']
    #allocation4 [shape = 's32[1]{0}', space=sflag, size = 0x4, scoped, tag = 'scoped memory for tpu_custom_call.1']
    #allocation5 [shape = 's32[1]{0}', space=sflag, size = 0x4, scoped, tag = 'scoped memory for tpu_custom_call.1']
    #allocation6 [shape = 'u8[32768]{0}', space=vmem, size = 0x8000, scoped, tag = 'input window, operand 2, single buffered']
    #allocation7 [shape = 's32[1]{0}', space=sflag, size = 0x4, scoped, tag = 'scoped memory for tpu_custom_call.1']
    #allocation8 [shape = 'u8[32768]{0}', space=vmem, size = 0x8000, scoped, tag = 'output window, operand 0, single buffered']
    %9 = vsyncpa [#allocation4], 0
    %10 = vsyncpa [#allocation7], 0
    %11 = vsyncpa [#allocation5], 0
    // Predicated region
    $region2: #{tpu_custom_call.1} parent=1 // pred_check
      _
    $region3: #{tpu_custom_call.1} parent=1 // pred_check_branch
      %13 = sbr.rel (0) target = $region5
    $region4: #{tpu_custom_call.1} parent=1 // pred_region
      _
    $region5: #{tpu_custom_call.1} parent=1 // pred_fallthru
      _
    // Predicated region
    $region6: #{tpu_custom_call.1} parent=1 // pred_check
      _
    $region7: #{tpu_custom_call.1} parent=1 // pred_check_branch
      %15 = sbr.rel (0) target = $region9
    $region8: #{tpu_custom_call.1} parent=1 // pred_region
      %17 = vsyncadd [#allocation4], 0
      %s18 = sshll.u32 %s1, 4
      %s19 = int_to_ptr.hbm [resolvable:$true] %s18
      %s20 = sshll.u32 [#allocation3], 4
      %s21 = int_to_ptr.vmem [resolvable:$true] %s20
      %26 = dma.hbm_to_vmem [thread:$0]  %s19, 1024, %s21, [#allocation4], 128, 128, 8
    $region9: #{tpu_custom_call.1} parent=1 // pred_fallthru
      _
    // Predicated region
    $region10: #{tpu_custom_call.1} parent=1 // pred_check
      _
    $region11: #{tpu_custom_call.1} parent=1 // pred_check_branch
      %28 = sbr.rel (0) target = $region13
    $region12: #{tpu_custom_call.1} parent=1 // pred_region
      %30 = vsyncadd [#allocation7], 0
      %s31 = sshll.u32 %s2, 4
      %s32 = int_to_ptr.hbm [resolvable:$true] %s31
      %s33 = sshll.u32 [#allocation6], 4
      %s34 = int_to_ptr.vmem [resolvable:$true] %s33
      %39 = dma.hbm_to_vmem [thread:$0]  %s32, 1024, %s34, [#allocation7], 128, 128, 8
    $region13: #{tpu_custom_call.1} parent=1 // pred_fallthru
      _
    // Predicated region
    $region14: #{tpu_custom_call.1} parent=1 // pred_check
      _
    $region15: #{tpu_custom_call.1} parent=1 // pred_check_branch
      %41 = sbr.rel (0) target = $region17
    $region16: #{tpu_custom_call.1} parent=1 // pred_region
      %43 = dma.done [#allocation4], 1024
    $region17: #{tpu_custom_call.1} parent=1 // pred_fallthru
      _
    // Predicated region
    $region18: #{tpu_custom_call.1} parent=1 // pred_check
      _
    $region19: #{tpu_custom_call.1} parent=1 // pred_check_branch
      %45 = sbr.rel (0) target = $region21
    $region20: #{tpu_custom_call.1} parent=1 // pred_region
      %47 = dma.done [#allocation7], 1024
    $region21: #{tpu_custom_call.1} parent=1 // pred_fallthru
      _
    %s48 = sld [smem:[#allocation2]]
    %v49 = vld [vmem:[#allocation6] sm:$0xff]
    %v50 = vld [vmem:[#allocation6 + $0x8] sm:$0xff]
    %v51 = vld [vmem:[#allocation6 + $0x10] sm:$0xff]
    %v52 = vld [vmem:[#allocation6 + $0x18] sm:$0xff]
    %v53 = vld [vmem:[#allocation6 + $0x20] sm:$0xff]
    %v54 = vld [vmem:[#allocation6 + $0x28] sm:$0xff]
    %v55 = vld [vmem:[#allocation6 + $0x30] sm:$0xff]
    %v56 = vld [vmem:[#allocation6 + $0x38] sm:$0xff]
    %v57 = vand.u32 2147483647, %v49
    %v58 = vand.u32 2147483647, %v50
    %v59 = vand.u32 2147483647, %v51
    %v60 = vand.u32 2147483647, %v52
    %v61 = vand.u32 2147483647, %v53
    %v62 = vand.u32 2147483647, %v54
    %v63 = vand.u32 2147483647, %v55
    %v64 = vand.u32 2147483647, %v56
    %v65 = vstv %s48
    %vm66 = vcmp.ge.f32.partialorder %v57, %v65
    %vm67 = vcmp.ge.f32.partialorder %v58, %v65
    %vm68 = vcmp.ge.f32.partialorder %v59, %v65
    %vm69 = vcmp.ge.f32.partialorder %v60, %v65
    %vm70 = vcmp.ge.f32.partialorder %v61, %v65
    %vm71 = vcmp.ge.f32.partialorder %v62, %v65
    %vm72 = vcmp.ge.f32.partialorder %v63, %v65
    %vm73 = vcmp.ge.f32.partialorder %v64, %v65
    %v74 = vld [vmem:[#allocation3] sm:$0xff]
    %v75 = vld [vmem:[#allocation3 + $0x8] sm:$0xff]
    %v76 = vld [vmem:[#allocation3 + $0x10] sm:$0xff]
    %v77 = vld [vmem:[#allocation3 + $0x18] sm:$0xff]
    %v78 = vld [vmem:[#allocation3 + $0x20] sm:$0xff]
    %v79 = vld [vmem:[#allocation3 + $0x28] sm:$0xff]
    %v80 = vld [vmem:[#allocation3 + $0x30] sm:$0xff]
    %v81 = vld [vmem:[#allocation3 + $0x38] sm:$0xff]
    %v82 = vsel %vm66, %v74, 0.0
    %v83 = vsel %vm67, %v75, 0.0
    %v84 = vsel %vm68, %v76, 0.0
    %v85 = vsel %vm69, %v77, 0.0
    %v86 = vsel %vm70, %v78, 0.0
    %v87 = vsel %vm71, %v79, 0.0
    %v88 = vsel %vm72, %v80, 0.0
    %v89 = vsel %vm73, %v81, 0.0
    %90 = vst [vmem:[#allocation8] sm:$0xff] %v82
    %91 = vst [vmem:[#allocation8 + $0x8] sm:$0xff] %v83
    %92 = vst [vmem:[#allocation8 + $0x10] sm:$0xff] %v84
    %93 = vst [vmem:[#allocation8 + $0x18] sm:$0xff] %v85
    %94 = vst [vmem:[#allocation8 + $0x20] sm:$0xff] %v86
    %95 = vst [vmem:[#allocation8 + $0x28] sm:$0xff] %v87
    %96 = vst [vmem:[#allocation8 + $0x30] sm:$0xff] %v88
    %97 = vst [vmem:[#allocation8 + $0x38] sm:$0xff] %v89
    // Predicated region
    $region22: #{tpu_custom_call.1} parent=1 // pred_check
      _
    $region23: #{tpu_custom_call.1} parent=1 // pred_check_branch
      %99 = sbr.rel (0) target = $region25
    $region24: #{tpu_custom_call.1} parent=1 // pred_region
      %101 = vsyncadd [#allocation5], 0
      %s102 = sshll.u32 [#allocation8], 4
      %s103 = int_to_ptr.vmem [resolvable:$true] %s102
      %s104 = sshll.u32 %s3, 4
      %s105 = int_to_ptr.hbm [resolvable:$true] %s104
      %110 = dma.vmem_to_hbm [thread:$0]  %s103, 1024, %s105, [#allocation5], 128, 128, 8
    $region25: #{tpu_custom_call.1} parent=1 // pred_fallthru
      _
    // Predicated region
    $region26: #{tpu_custom_call.1} parent=1 // pred_check
      _
    $region27: #{tpu_custom_call.1} parent=1 // pred_check_branch
      %112 = sbr.rel (0) target = $region29
    $region28: #{tpu_custom_call.1} parent=1 // pred_region
      %114 = dma.done [#allocation5], 1024
    $region29: #{tpu_custom_call.1} parent=1 // pred_fallthru
      _
    %115 = vsyncpa [#allocation4], 1
    %116 = vsyncpa [#allocation7], 1
    %117 = vsyncpa [#allocation5], 1

</llo_original>
